<compile_context>
chip_gen: v5e
topology: v5e:2x2
jax: 0.10.0
libtpu: 0.0.40
codegen_flags: <defaults>
</compile_context>

<pallas_src>
import math

import jax
import jax.numpy as jnp
from jax import lax
from jax.experimental import pallas as pl
from jax.experimental.pallas import tpu as pltpu

M_MARGIN = 4  # module default m=4


def _angle_softmax_kernel(lamb_ref, label_ref, x_ref, wt_ref, invw_ref, o_ref):
    lam = lamb_ref[0, 0]                 # f32 scalar from SMEM
    j = pl.program_id(1)                 # class-tile index

    x = x_ref[...]                       # (TN, K)  input dtype (bf16-friendly MXU operand)
    wt = wt_ref[...]                     # (K, TC)  un-normalized weight, transposed
    lab = label_ref[...]                 # (TN, 1)  int32
    inv_wn = invw_ref[...]               # (1, TC)  f32, 1 / ||w_c||

    # Raw logits: (x . w_c) / ||w_c|| == cos(theta_c) * ||x||.
    # For every non-target column this IS the module output already.
    dot = jnp.dot(x, wt, preferred_element_type=jnp.float32) * inv_wn   # (TN, TC) f32

    # Per-row ||x|| via rsqrt (EUP slot, no VPU divides).
    xf = x.astype(jnp.float32)
    xsq = jnp.maximum(jnp.sum(xf * xf, axis=1, keepdims=True), 1e-24)   # (TN, 1)
    inv_xlen = lax.rsqrt(xsq)
    xlen = xsq * inv_xlen                                               # = sqrt(xsq)

    # One-hot of the label against GLOBAL class indices of this C-tile.
    tn, tc = dot.shape
    col = lax.broadcasted_iota(jnp.int32, (tn, tc), 1) + j * tc
    onehot = col == lab                                                 # (TN, TC)

    # Target-column logit and cosine (zero when the label is not in this C-tile;
    # the correction is masked by `onehot` so that case contributes nothing).
    tgt = jnp.sum(jnp.where(onehot, dot, 0.0), axis=1, keepdims=True)   # (TN, 1)
    cos_t = tgt * inv_xlen

    # psi(theta) on the (TN, 1) target vector only (m = 4):
    #   cos(4*theta) = 8 c^4 - 8 c^2 + 1 ;  k = floor(4*acos(c)/pi) via monotone thresholds.
    c2 = cos_t * cos_t
    cos_m = 8.0 * c2 * c2 - 8.0 * c2 + 1.0
    k = jnp.zeros_like(cos_t, dtype=jnp.int32)
    for step in range(1, M_MARGIN + 1):
        thr = math.cos(step * math.pi / M_MARGIN)
        k = k + (cos_t <= thr).astype(jnp.int32)
    sign = (1 - 2 * (k & 1)).astype(jnp.float32)                        # (-1)^k, integer parity
    psi = sign * cos_m - 2.0 * k.astype(jnp.float32)

    # out = dot everywhere; only the label column is corrected:
    #   out_target = lam*psi*||x|| + (1-lam)*dot_target = dot_target + lam*(psi*||x|| - dot_target)
    corr = lam * (psi * xlen - tgt)                                     # (TN, 1)
    o_ref[...] = (dot + jnp.where(onehot, corr, 0.0)).astype(o_ref.dtype)


def _round_up(a, b):
    return ((a + b - 1) // b) * b


@jax.jit
def angle_softmax(x, weight, y, lamb):
    """Forward of AngleSoftmax: x (N, K), weight (C, K), y (N,) int, lamb scalar."""
    N, K = x.shape
    C = weight.shape[0]

    # Lane-dense tiles, re-derived from the problem size so tiny shapes stay legal.
    # (TN=256, TC=512, K<=1024) f32 double-buffered is a few MiB -> safe under the
    # 32 MiB scoped-VMEM default on v7x as well as v5e/v6e.
    TN = min(256, _round_up(N, 8))
    TC = min(512, _round_up(C, 128))
    Np = _round_up(N, TN)
    Cp = _round_up(C, TC)

    xp = jnp.pad(x, ((0, Np - N), (0, 0)))
    lab = jnp.pad(y.astype(jnp.int32), (0, Np - N)).reshape(Np, 1)
    wp = jnp.pad(weight, ((0, Cp - C), (0, 0)))

    # No normalized weight copy: transpose once + (1, C) inverse norms; the column
    # scale is applied on the matmul output inside the kernel.
    wt = wp.T                                                           # (K, Cp)
    inv_wnorm = lax.rsqrt(
        jnp.maximum(jnp.sum(wp.astype(jnp.float32) ** 2, axis=1), 1e-24)
    ).reshape(1, Cp)
    lamb_arr = jnp.asarray(lamb, dtype=jnp.float32).reshape(1, 1)

    grid = (Np // TN, Cp // TC)
    out = pl.pallas_call(
        _angle_softmax_kernel,
        out_shape=jax.ShapeDtypeStruct((Np, Cp), x.dtype),
        grid_spec=pltpu.PrefetchScalarGridSpec(
            num_scalar_prefetch=0,
            grid=grid,
            in_specs=[
                pl.BlockSpec(memory_space=pltpu.MemorySpace.SMEM),      # lamb (1,1)
                pl.BlockSpec((TN, 1), lambda i, j: (i, 0)),             # labels
                pl.BlockSpec((TN, K), lambda i, j: (i, 0)),             # x
                pl.BlockSpec((K, TC), lambda i, j: (0, j)),             # weight^T
                pl.BlockSpec((1, TC), lambda i, j: (0, j)),             # 1/||w_c||
            ],
            out_specs=pl.BlockSpec((TN, TC), lambda i, j: (i, j)),
        ),
        compiler_params=pltpu.CompilerParams(
            dimension_semantics=("parallel", "parallel")),
        # TODO(synk): for very large K add a third "arbitrary" K grid axis with a
        # f32 VMEM accumulator; SphereFace feature dims (<=1024) fit in one tile.
    )(lamb_arr, lab, xp, wt, inv_wnorm)
    return out[:N, :C]


def _angle_softmax_reference(x, weight, y, lamb, m=M_MARGIN):
    """Pure-JAX port of PhiKernel4.forward for validation."""
    xlen = jnp.sqrt(jnp.sum(x * x, axis=1, keepdims=True))
    wn = weight / jnp.maximum(
        jnp.sqrt(jnp.sum(weight * weight, axis=1, keepdims=True)), 1e-12)
    xn = x / jnp.maximum(xlen, 1e-12)
    cos_theta = xn @ wn.T
    cos_m_theta = 8.0 * cos_theta ** 4 - 8.0 * cos_theta ** 2 + 1.0
    k = jnp.floor(m * jnp.arccos(jnp.clip(cos_theta, -1.0, 1.0)) / math.pi)
    sign = 1.0 - 2.0 * jnp.mod(k, 2.0)
    psi = sign * cos_m_theta - 2.0 * k
    onehot = y[:, None] == jnp.arange(weight.shape[0])[None, :]
    out = jnp.where(onehot, psi * lamb + cos_theta * (1.0 - lamb), cos_theta)
    return out * xlen


if __name__ == "__main__":
    key = jax.random.PRNGKey(0)
    N, input_size, output_size = 12, 32, 20
    kx, kw, ky = jax.random.split(key, 3)

    x = jax.random.normal(kx, (N, input_size), dtype=jnp.float32)
    # nn.init.kaiming_uniform_(weight, a=1.0): bound = sqrt(3 / fan_in)
    bound = math.sqrt(3.0 / input_size)
    weight = jax.random.uniform(
        kw, (output_size, input_size), minval=-bound, maxval=bound, dtype=jnp.float32
    )
    y = jax.random.randint(ky, (N,), 0, output_size, dtype=jnp.int32)
    lamb = 5.0

    out = angle_softmax(x, weight, y, lamb)
    jax.block_until_ready(out)
    assert out.shape == (N, output_size)

    ref = _angle_softmax_reference(x, weight, y, lamb)
    max_err = float(jnp.max(jnp.abs(out - ref)))
    assert max_err < 1e-3, f"max abs err {max_err}"
    print("KERNEL_OK")
</pallas_src>

<mosaic_0001>
module attributes {stable_mosaic.version = 11 : i64} {
  func.func @_angle_softmax_kernel(%arg0: i32, %arg1: i32, %arg2: memref<1x1xf32, #tpu.memory_space<smem>>, %arg3: memref<16x1xi32, #tpu.memory_space<vmem>>, %arg4: memref<16x32xf32, #tpu.memory_space<vmem>>, %arg5: memref<32x128xf32, #tpu.memory_space<vmem>>, %arg6: memref<1x128xf32, #tpu.memory_space<vmem>>, %arg7: memref<16x128xf32, #tpu.memory_space<vmem>>) attributes {dimension_semantics = [#tpu.dimension_semantics<parallel>, #tpu.dimension_semantics<parallel>], iteration_bounds = array<i64: 1, 1>, scalar_prefetch = 0 : i64, scratch_operands = 0 : i64, tpu.core_type = #tpu.core_type<tc>, window_params = [{transform_indices = @transform_0, window_bounds = array<i64: 1, 1>}, {transform_indices = @transform_1, window_bounds = array<i64: 16, 1>}, {transform_indices = @transform_2, window_bounds = array<i64: 16, 32>}, {transform_indices = @transform_3, window_bounds = array<i64: 32, 128>}, {transform_indices = @transform_4, window_bounds = array<i64: 1, 128>}, {transform_indices = @transform_5, window_bounds = array<i64: 16, 128>}]} {
    %c0 = arith.constant 0 : index
    %c0_0 = arith.constant 0 : index
    %0 = memref.load %arg2[%c0, %c0_0] : memref<1x1xf32, #tpu.memory_space<smem>>
    %c0_1 = arith.constant 0 : index
    %c0_2 = arith.constant 0 : index
    %1 = vector.load %arg4[%c0_1, %c0_2] : memref<16x32xf32, #tpu.memory_space<vmem>>, vector<16x32xf32>
    %c0_3 = arith.constant 0 : index
    %c0_4 = arith.constant 0 : index
    %2 = vector.load %arg5[%c0_3, %c0_4] : memref<32x128xf32, #tpu.memory_space<vmem>>, vector<32x128xf32>
    %c0_5 = arith.constant 0 : index
    %c0_6 = arith.constant 0 : index
    %3 = vector.load %arg3[%c0_5, %c0_6] : memref<16x1xi32, #tpu.memory_space<vmem>>, vector<16x1xi32>
    %c0_7 = arith.constant 0 : index
    %c0_8 = arith.constant 0 : index
    %4 = vector.load %arg6[%c0_7, %c0_8] : memref<1x128xf32, #tpu.memory_space<vmem>>, vector<1x128xf32>
    %cst = arith.constant dense<0.000000e+00> : vector<16x128xf32>
    %5 = tpu.matmul %1, %2, %cst {dimension_numbers = #tpu.dot_dimension_numbers<[1], [0], [0], [1], [0, 0, 1, 1], [], []>} : vector<16x32xf32>, vector<32x128xf32>, vector<16x128xf32> -> vector<16x128xf32>
    %6 = vector.broadcast %4 : vector<1x128xf32> to vector<16x128xf32>
    %7 = arith.mulf %5, %6 : vector<16x128xf32>
    %8 = arith.mulf %1, %1 : vector<16x32xf32>
    %cst_9 = arith.constant dense<0.000000e+00> : vector<16xf32>
    %9 = vector.multi_reduction <add>, %8, %cst_9 [1] : vector<16x32xf32> to vector<16xf32>
    %10 = vector.shape_cast %9 : vector<16xf32> to vector<16x1xf32>
    %cst_10 = arith.constant 1.000000e-24 : f32
    %11 = vector.broadcast %cst_10 : f32 to vector<16x1xf32>
    %12 = arith.maximumf %10, %11 : vector<16x1xf32>
    %13 = math.rsqrt %12 : vector<16x1xf32>
    %14 = arith.mulf %12, %13 : vector<16x1xf32>
    %15 = tpu.iota {dimensions = array<i32: 1>} : vector<16x128xi32>
    %c128_i32 = arith.constant 128 : i32
    %16 = arith.muli %arg1, %c128_i32 : i32
    %17 = vector.broadcast %16 : i32 to vector<16x128xi32>
    %18 = arith.addi %15, %17 : vector<16x128xi32>
    %19 = vector.broadcast %3 : vector<16x1xi32> to vector<16x128xi32>
    %20 = arith.cmpi eq, %18, %19 : vector<16x128xi32>
    %cst_11 = arith.constant 0.000000e+00 : f32
    %21 = vector.broadcast %cst_11 : f32 to vector<16x128xf32>
    %22 = arith.select %20, %7, %21 : vector<16x128xi1>, vector<16x128xf32>
    %cst_12 = arith.constant dense<0.000000e+00> : vector<16xf32>
    %23 = vector.multi_reduction <add>, %22, %cst_12 [1] : vector<16x128xf32> to vector<16xf32>
    %24 = vector.shape_cast %23 : vector<16xf32> to vector<16x1xf32>
    %25 = arith.mulf %24, %13 : vector<16x1xf32>
    %26 = arith.mulf %25, %25 : vector<16x1xf32>
    %cst_13 = arith.constant 8.000000e+00 : f32
    %27 = vector.broadcast %cst_13 : f32 to vector<16x1xf32>
    %28 = arith.mulf %27, %26 : vector<16x1xf32>
    %29 = arith.mulf %28, %26 : vector<16x1xf32>
    %cst_14 = arith.constant 8.000000e+00 : f32
    %30 = vector.broadcast %cst_14 : f32 to vector<16x1xf32>
    %31 = arith.mulf %30, %26 : vector<16x1xf32>
    %32 = arith.subf %29, %31 : vector<16x1xf32>
    %cst_15 = arith.constant 1.000000e+00 : f32
    %33 = vector.broadcast %cst_15 : f32 to vector<16x1xf32>
    %34 = arith.addf %32, %33 : vector<16x1xf32>
    %c0_i32 = arith.constant 0 : i32
    %35 = vector.broadcast %c0_i32 : i32 to vector<16x1xi32>
    %cst_16 = arith.constant 0.707106769 : f32
    %36 = vector.broadcast %cst_16 : f32 to vector<16x1xf32>
    %37 = arith.cmpf ole, %25, %36 : vector<16x1xf32>
    %38 = arith.extui %37 : vector<16x1xi1> to vector<16x1xi32>
    %39 = arith.addi %35, %38 : vector<16x1xi32>
    %cst_17 = arith.constant 6.12323426E-17 : f32
    %40 = vector.broadcast %cst_17 : f32 to vector<16x1xf32>
    %41 = arith.cmpf ole, %25, %40 : vector<16x1xf32>
    %42 = arith.extui %41 : vector<16x1xi1> to vector<16x1xi32>
    %43 = arith.addi %39, %42 : vector<16x1xi32>
    %cst_18 = arith.constant -0.707106769 : f32
    %44 = vector.broadcast %cst_18 : f32 to vector<16x1xf32>
    %45 = arith.cmpf ole, %25, %44 : vector<16x1xf32>
    %46 = arith.extui %45 : vector<16x1xi1> to vector<16x1xi32>
    %47 = arith.addi %43, %46 : vector<16x1xi32>
    %cst_19 = arith.constant -1.000000e+00 : f32
    %48 = vector.broadcast %cst_19 : f32 to vector<16x1xf32>
    %49 = arith.cmpf ole, %25, %48 : vector<16x1xf32>
    %50 = arith.extui %49 : vector<16x1xi1> to vector<16x1xi32>
    %51 = arith.addi %47, %50 : vector<16x1xi32>
    %c1_i32 = arith.constant 1 : i32
    %52 = vector.broadcast %c1_i32 : i32 to vector<16x1xi32>
    %53 = arith.andi %51, %52 : vector<16x1xi32>
    %c2_i32 = arith.constant 2 : i32
    %54 = vector.broadcast %c2_i32 : i32 to vector<16x1xi32>
    %55 = arith.muli %54, %53 : vector<16x1xi32>
    %c1_i32_20 = arith.constant 1 : i32
    %56 = vector.broadcast %c1_i32_20 : i32 to vector<16x1xi32>
    %57 = arith.subi %56, %55 : vector<16x1xi32>
    %58 = arith.sitofp %57 : vector<16x1xi32> to vector<16x1xf32>
    %59 = arith.mulf %58, %34 : vector<16x1xf32>
    %60 = arith.sitofp %51 : vector<16x1xi32> to vector<16x1xf32>
    %cst_21 = arith.constant 2.000000e+00 : f32
    %61 = vector.broadcast %cst_21 : f32 to vector<16x1xf32>
    %62 = arith.mulf %61, %60 : vector<16x1xf32>
    %63 = arith.subf %59, %62 : vector<16x1xf32>
    %64 = arith.mulf %63, %14 : vector<16x1xf32>
    %65 = arith.subf %64, %24 : vector<16x1xf32>
    %66 = vector.broadcast %0 : f32 to vector<16x1xf32>
    %67 = arith.mulf %66, %65 : vector<16x1xf32>
    %cst_22 = arith.constant 0.000000e+00 : f32
    %68 = vector.shape_cast %67 : vector<16x1xf32> to vector<16x1xf32>
    %69 = vector.broadcast %68 : vector<16x1xf32> to vector<16x128xf32>
    %70 = vector.broadcast %cst_22 : f32 to vector<16x128xf32>
    %71 = arith.select %20, %69, %70 : vector<16x128xi1>, vector<16x128xf32>
    %72 = arith.addf %7, %71 : vector<16x128xf32>
    %c0_23 = arith.constant 0 : index
    %c0_24 = arith.constant 0 : index
    %73 = vector.load %arg7[%c0_23, %c0_24] : memref<16x128xf32, #tpu.memory_space<vmem>>, vector<16x128xf32>
    tpu.vector_store %arg7[%c0_23, %c0_24], %72 {strides = array<i32>} : memref<16x128xf32, #tpu.memory_space<vmem>>, vector<16x128xf32>,
    return
  }
  func.func @transform_0(%arg0: i32, %arg1: i32) -> (i32, i32) {
    %c0_i32 = arith.constant 0 : i32
    %c0_i32_0 = arith.constant 0 : i32
    %c0_i32_1 = arith.constant 0 : i32
    return %c0_i32, %c0_i32_0 : i32, i32
  }
  func.func @transform_1(%arg0: i32, %arg1: i32) -> (i32, i32) {
    %c0_i32 = arith.constant 0 : i32
    %c0_i32_0 = arith.constant 0 : i32
    return %arg0, %c0_i32 : i32, i32
  }
  func.func @transform_2(%arg0: i32, %arg1: i32) -> (i32, i32) {
    %c0_i32 = arith.constant 0 : i32
    %c0_i32_0 = arith.constant 0 : i32
    return %arg0, %c0_i32 : i32, i32
  }
  func.func @transform_3(%arg0: i32, %arg1: i32) -> (i32, i32) {
    %c0_i32 = arith.constant 0 : i32
    %c0_i32_0 = arith.constant 0 : i32
    return %c0_i32, %arg1 : i32, i32
  }
  func.func @transform_4(%arg0: i32, %arg1: i32) -> (i32, i32) {
    %c0_i32 = arith.constant 0 : i32
    %c0_i32_0 = arith.constant 0 : i32
    return %c0_i32, %arg1 : i32, i32
  }
  func.func @transform_5(%arg0: i32, %arg1: i32) -> (i32, i32) {
    %c0_i32 = arith.constant 0 : i32
    return %arg0, %arg1 : i32, i32
  }
}

</mosaic_0001>

<llo_original>
// kernel: angle_softmax.1
$region0: #{angle_softmax.1}
  #allocation0 [shape = 'u32[]', space=smem, size = 0x4, offset = 0x4, fixed_abs, tag = 'smem constant byte address 0x4 - core index']
  #allocation1 [shape = 'u32[72,128]{1,0:T(1,128)}', space=vmem, size = 0x9000, scoped, tag = 'internal scratch']
  #allocation2 [shape = 'f32[1,1]{1,0:T(1,128)S(6)}', space=smem, size = 0x200, scoped, tag = 'scoped memory for angle_softmax.1']
  %s0 = inlined_call_operand.<no memory space> [shape: f32[1,1], index: 0, kind: input, shape index: {}]
  %s1 = inlined_call_operand.vmem [shape: s32[16,1], index: 1, kind: input, shape index: {}]
  %s2 = inlined_call_operand.vmem [shape: f32[16,32], index: 2, kind: input, shape index: {}]
  %s3 = inlined_call_operand.vmem [shape: f32[32,128], index: 3, kind: input, shape index: {}]
  %s4 = inlined_call_operand.vmem [shape: f32[1,128], index: 4, kind: input, shape index: {}]
  %s5 = inlined_call_operand.hbm [shape: f32[16,128], index: 5, kind: output, shape index: {}]
  %s6 = sld [smem:[#allocation0]]
  $region30: #{angle_softmax.1} parent=0
    _
  %s8 = ssub.s32 1, %s6
  %s9 = scalar_select 0, %s8, %s6
  %10 = sst [smem:[#allocation2]] %s0
  $region1: #{angle_softmax.1} parent=0
    #allocation3 [shape = 'u8[8192]{0}', space=vmem, size = 0x2000, scoped, tag = 'output window, operand 0, single buffered']
    #allocation4 [shape = 's32[1]{0}', space=sflag, size = 0x4, scoped, tag = 'scoped memory for angle_softmax.1']
    %11 = vsyncpa [#allocation4], 0
    // Predicated region
    $region2: #{angle_softmax.1} parent=1 // pred_check
      _
    $region3: #{angle_softmax.1} parent=1 // pred_check_branch
      %13 = sbr.rel (0) target = $region5
    $region4: #{angle_softmax.1} parent=1 // pred_region
      _
    $region5: #{angle_softmax.1} parent=1 // pred_fallthru
      _
    // Predicated region
    $region6: #{angle_softmax.1} parent=1 // pred_check
      _
    $region7: #{angle_softmax.1} parent=1 // pred_check_branch
      %15 = sbr.rel (0) target = $region9
    $region8: #{angle_softmax.1} parent=1 // pred_region
      _
    $region9: #{angle_softmax.1} parent=1 // pred_fallthru
      _
    // Predicated region
    $region10: #{angle_softmax.1} parent=1 // pred_check
      _
    $region11: #{angle_softmax.1} parent=1 // pred_check_branch
      %17 = sbr.rel (0) target = $region13
    $region12: #{angle_softmax.1} parent=1 // pred_region
      _
    $region13: #{angle_softmax.1} parent=1 // pred_fallthru
      _
    // Predicated region
    $region14: #{angle_softmax.1} parent=1 // pred_check
      _
    $region15: #{angle_softmax.1} parent=1 // pred_check_branch
      %19 = sbr.rel (0) target = $region17
    $region16: #{angle_softmax.1} parent=1 // pred_region
      _
    $region17: #{angle_softmax.1} parent=1 // pred_fallthru
      _
    // Predicated region
    $region18: #{angle_softmax.1} parent=1 // pred_check
      _
    $region19: #{angle_softmax.1} parent=1 // pred_check_branch
      %21 = sbr.rel (0) target = $region21
    $region20: #{angle_softmax.1} parent=1 // pred_region
      _
    $region21: #{angle_softmax.1} parent=1 // pred_fallthru
      _
    %s22 = sld [smem:[#allocation2]]
    %v23 = vld [vmem:[%s2] sm:$0xff]
    %v24 = vld [vmem:[%s2 + $0x8] sm:$0xff]
    %v25 = vld [vmem:[%s3] sm:$0xff]
    %v26 = vld [vmem:[%s3 + $0x8] sm:$0xff]
    %v27 = vld [vmem:[%s3 + $0x10] sm:$0xff]
    %v28 = vld [vmem:[%s3 + $0x18] sm:$0xff]
    %v29 = vld [vmem:[%s1] sm:$0xff]
    %v30 = vld [vmem:[%s1 + $0x8] sm:$0xff]
    %v31 = vld [vmem:[%s4] sm:$0x1]
    %vm32 = vcmask 261120
    %v34 = vsel %vm32, %v23, 0
    %v37 = vsel %vm32, %v24, 0
    %39 = vmatpush.msra.mxu0 0.0
    %40 = vmatpush.msra.mxu0 0.0
    %41 = vmatpush.msra.mxu0 0.0
    %42 = vmatpush.msra.mxu0 0.0
    %43 = vmatpush.msra.mxu0 0.0
    %44 = vmatpush.msra.mxu0 0.0
    %45 = vmatpush.msra.mxu0 0.0
    %46 = vmatpush.msra.mxu0 0.0
    %47 = vmatpush.msra.mxu0 0.0
    %48 = vmatpush.msra.mxu0 0.0
    %49 = vmatpush.msra.mxu0 0.0
    %50 = vmatpush.msra.mxu0 0.0
    %51 = vmatpush.msra.mxu0 %v28
    %52 = vmatpush.msra.mxu0 %v27
    %53 = vmatpush.msra.mxu0 %v26
    %54 = vmatpush.msra.mxu0 %v25
    %55 = vmatmul.f32.gmra.mxu0 %v34
    %v56 = vpop.f32.mrf.mxu0
    %v57 = vadd.f32 0.0, %v56
    %58 = vmatmul.f32.gmra.mxu0 %v37
    %v59 = vpop.f32.mrf.mxu0
    %v60 = vadd.f32 0.0, %v59
    %61 = vdwg.mxu0
    %v63 = vperm.slane %v31, 0
    %v65 = vmul.f32 %v57, %v63
    %v66 = vmul.f32 %v60, %v63
    %v67 = vmul.f32 %v23, %v23
    %v68 = vmul.f32 %v24, %v24
    %v69 = vsel %vm32, %v67, 0.0
    %70 = vadd.xlane.f32.xlu0 %v69
    %v71 = vpop.xlane.xlu0 %70
    %v72 = vsel %vm32, %v68, 0.0
    %73 = vadd.xlane.f32.xlu0 %v72
    %v74 = vpop.xlane.xlu0 %73
    %v75 = vmax.f32 %v71, 1e-24
    %v76 = vmax.f32 %v74, 1e-24
    %v77 = vrsqrt.pop %v75
    %v78 = vmul.f32 %v77, %v75
    %v79 = vmul.f32 %v78, %v77
    %v80 = vmul.f32 0.5, %v79
    %v81 = vsub.f32 1.5, %v80
    %v82 = vmul.f32 %v77, %v81
    %vm83 = vweird.f32 %v75
    %vm84 = vweird.f32 %v77
    %vm85 = vmor %vm83, %vm84
    %v86 = vsel %vm85, %v77, %v82
    %v87 = vrsqrt.pop %v76
    %v88 = vmul.f32 %v87, %v76
    %v89 = vmul.f32 %v88, %v87
    %v90 = vmul.f32 0.5, %v89
    %v91 = vsub.f32 1.5, %v90
    %v92 = vmul.f32 %v87, %v91
    %vm93 = vweird.f32 %v76
    %vm94 = vweird.f32 %v87
    %vm95 = vmor %vm93, %vm94
    %v96 = vsel %vm95, %v87, %v92
    %v97 = vmul.f32 %v75, %v86
    %v98 = vmul.f32 %v76, %v96
    %v99 = vlaneseq
    %v100 = vand.u32 %v99, 127
    %s101 = smul.u32 0, 128
    %v102 = vstv %s101
    %v103 = vadd.s32 %v100, %v102
    %104 = vset.pattern.permute.xlu0 0
    %105 = vperm.xlu0 %104, %v29
    %v106 = vpop.permute.xlu0 %105
    %107 = vset.pattern.permute.xlu0 0
    %108 = vperm.xlu0 %107, %v30
    %v109 = vpop.permute.xlu0 %108
    %vm110 = vcmp.eq.s32.totalorder %v103, %v106
    %vm111 = vcmp.eq.s32.totalorder %v103, %v109
    %v112 = vsel %vm110, %v65, 0.0
    %v113 = vsel %vm111, %v66, 0.0
    %114 = vadd.xlane.f32.xlu0 %v112
    %v115 = vpop.xlane.xlu0 %114
    %116 = vadd.xlane.f32.xlu0 %v113
    %v117 = vpop.xlane.xlu0 %116
    %v118 = vmul.f32 %v115, %v86
    %v119 = vmul.f32 %v117, %v96
    %v120 = vmul.f32 %v118, %v118
    %v121 = vmul.f32 %v119, %v119
    %v122 = vmul.f32 %v120, 8.0
    %v123 = vmul.f32 %v121, 8.0
    %v124 = vmul.f32 %v122, %v120
    %v125 = vmul.f32 %v123, %v121
    %v126 = vsub.f32 %v124, %v122
    %v127 = vsub.f32 %v125, %v123
    %v128 = vadd.f32 %v126, 1.0
    %v129 = vadd.f32 %v127, 1.0
    %vm130 = vcmp.le.f32.partialorder %v118, 0.70710677
    %vm131 = vcmp.le.f32.partialorder %v119, 0.70710677
    %v132 = vsel %vm130, 1, 0
    %v133 = vsel %vm131, 1, 0
    %vm134 = vcmp.le.f32.partialorder %v118, 6.123234e-17
    %vm135 = vcmp.le.f32.partialorder %v119, 6.123234e-17
    %v136 = vsel %vm134, 1, 0
    %v137 = vsel %vm135, 1, 0
    %v138 = vadd.s32 %v132, %v136
    %v139 = vadd.s32 %v133, %v137
    %vm140 = vcmp.le.f32.partialorder %v118, -0.70710677
    %vm141 = vcmp.le.f32.partialorder %v119, -0.70710677
    %v142 = vsel %vm140, 1, 0
    %v143 = vsel %vm141, 1, 0
    %v144 = vadd.s32 %v138, %v142
    %v145 = vadd.s32 %v139, %v143
    %vm146 = vcmp.le.f32.partialorder %v118, -1.0
    %vm147 = vcmp.le.f32.partialorder %v119, -1.0
    %v148 = vsel %vm146, 1, 0
    %v149 = vsel %vm147, 1, 0
    %v150 = vadd.s32 %v144, %v148
    %v151 = vadd.s32 %v145, %v149
    %v152 = vand.u32 %v150, 1
    %v153 = vand.u32 %v151, 1
    %v154 = vmul.u32 %v152, 2
    %v155 = vmul.u32 %v153, 2
    %v156 = vsub.s32 1, %v154
    %v157 = vsub.s32 1, %v155
    %v158 = vcvt.s32.f32 %v156
    %v159 = vcvt.s32.f32 %v157
    %v160 = vmul.f32 %v158, %v128
    %v161 = vmul.f32 %v159, %v129
    %v162 = vcvt.s32.f32 %v150
    %v163 = vcvt.s32.f32 %v151
    %v164 = vmul.f32 %v162, 2.0
    %v165 = vmul.f32 %v163, 2.0
    %v166 = vsub.f32 %v160, %v164
    %v167 = vsub.f32 %v161, %v165
    %v168 = vmul.f32 %v166, %v97
    %v169 = vmul.f32 %v167, %v98
    %v170 = vsub.f32 %v168, %v115
    %v171 = vsub.f32 %v169, %v117
    %v172 = vstv %s22
    %v173 = vmul.f32 %v172, %v170
    %v174 = vmul.f32 %v172, %v171
    %v175 = vsel %vm110, %v173, 0.0
    %v176 = vsel %vm111, %v174, 0.0
    %v177 = vadd.f32 %v65, %v175
    %v178 = vadd.f32 %v66, %v176
    %179 = vst [vmem:[#allocation3] sm:$0xff] %v177
    %180 = vst [vmem:[#allocation3 + $0x8] sm:$0xff] %v178
    // Predicated region
    $region22: #{angle_softmax.1} parent=1 // pred_check
      _
    $region23: #{angle_softmax.1} parent=1 // pred_check_branch
      %182 = sbr.rel (0) target = $region25
    $region24: #{angle_softmax.1} parent=1 // pred_region
      %184 = vsyncadd [#allocation4], 0
      %s185 = sshll.u32 [#allocation3], 4
      %s186 = int_to_ptr.vmem [resolvable:$true] %s185
      %s187 = sshll.u32 %s5, 4
      %s188 = int_to_ptr.hbm [resolvable:$true] %s187
      %193 = dma.vmem_to_hbm [thread:$0]  %s186, 256, %s188, [#allocation4], 128, 128, 8
    $region25: #{angle_softmax.1} parent=1 // pred_fallthru
      _
    // Predicated region
    $region26: #{angle_softmax.1} parent=1 // pred_check
      _
    $region27: #{angle_softmax.1} parent=1 // pred_check_branch
      %195 = sbr.rel (0) target = $region29
    $region28: #{angle_softmax.1} parent=1 // pred_region
      %197 = dma.done [#allocation4], 256
    $region29: #{angle_softmax.1} parent=1 // pred_fallthru
      _
    %198 = vsyncpa [#allocation4], 1

</llo_original>
